<compile_context>
chip_gen: v5e
topology: v5e:2x2
jax: 0.10.0
libtpu: 0.0.40
codegen_flags: <defaults>
</compile_context>

<pallas_src>
import functools
import math

import jax
import jax.numpy as jnp
from jax import lax
from jax.experimental import pallas as pl
from jax.experimental.pallas import tpu as pltpu

_LANE = 128   # vreg lane width
_SUB = 8      # f32 sublanes per vreg (accumulator block is (8, 128))


def _round_up(x, m):
    return (x + m - 1) // m * m


def _chip_config():
    """(num_shards, max_block_rows, vmem_limit_bytes) derived from the chip."""
    try:
        kind = jax.devices()[0].device_kind.lower()
    except Exception:
        kind = ""
    # Chips presenting 2 TensorCores per Pallas device (megacore): v4, v7x.
    two_tc = any(tag in kind for tag in ("v4", "v7", "7x"))
    num_shards = 2 if two_tc else 1
    if two_tc:
        # v7x: 64 MiB VMEM / TC, 32 MiB default scoped limit -> 2 MiB blocks
        # (8 MiB double-buffered inputs) fit comfortably under the default.
        return num_shards, 4096, None
    if "v6" in kind or "v5" in kind:
        # v5e / v6e: 128 MiB physical VMEM; raise the scoped limit so 2 MiB
        # blocks plus elementwise temporaries never hit the 16/32 MiB default.
        return num_shards, 4096, 64 * 1024 * 1024
    # Unknown chip: conservative proven configuration, default scoped limit.
    return num_shards, 2048, None


_NUM_SHARDS, _MAX_BLOCK_ROWS, _VMEM_LIMIT = _chip_config()


def _part_attention_loss_kernel(soft_ref, tgt_ref, acc_ref, *,
                                steps, block_rows, block_elems,
                                n_valid, first_pad_tile):
    c = pl.program_id(0)          # shard (parallel; 2 only on 2-TC chips)
    i = pl.program_id(1)          # step within the shard (reduction axis)

    @pl.when(i == 0)
    def _():
        acc_ref[...] = jnp.zeros_like(acc_ref)

    soft = soft_ref[...].astype(jnp.float32)
    tgt = tgt_ref[...].astype(jnp.float32)

    p_t = (tgt * (soft - 0.5) + 0.5) * 0.9999 + 1e-05
    # lamda == 1 in the reference module  ->  (1 - p_t)**lamda == (1 - p_t)
    # TODO(synk): for a general non-integer lamda use jnp.power(1 - p_t, lamda).
    val = -jnp.log(p_t) * (1.0 - p_t)

    # NOTE: int32 tile arithmetic; inputs beyond ~2^31 elements are unsupported.
    t = c * steps + i                     # logical (unclamped) global tile index
    rem = n_valid - t * block_elems       # valid elements remaining in this tile

    @pl.when(t < first_pad_tile)          # steady state: tile is 100% real data
    def _():
        acc_ref[...] += val.reshape(block_rows // _SUB, _SUB, _LANE).sum(axis=0)

    # Boundary tile (touches the tail past n_valid).  Fully dead tiles from
    # shard rounding (rem <= 0) skip the iota/mask/add work entirely.
    @pl.when(jnp.logical_and(t >= first_pad_tile, rem > 0))
    def _():
        row = lax.broadcasted_iota(jnp.int32, (block_rows, _LANE), 0)
        col = lax.broadcasted_iota(jnp.int32, (block_rows, _LANE), 1)
        keep = row * _LANE + col < rem    # select (not multiply): OOB lanes may be NaN
        masked = jnp.where(keep, val, 0.0)
        acc_ref[...] += masked.reshape(block_rows // _SUB, _SUB, _LANE).sum(axis=0)


@jax.jit
def part_attention_loss(softMatrix, target):
    """JAX/Pallas equivalent of PartAttentionLoss.forward (lamda = 1)."""
    assert softMatrix.shape == target.shape
    batch = softMatrix.shape[0]
    n = math.prod(softMatrix.shape)

    # Sublane multiple required by the narrower input dtype (f32:8, bf16:16, i8:32).
    min_item = min(jnp.dtype(softMatrix.dtype).itemsize,
                   jnp.dtype(target.dtype).itemsize)
    sub_mult = max(_SUB, 32 // max(1, min_item))

    rows = -(-n // _LANE)
    block_rows = min(_MAX_BLOCK_ROWS, _round_up(rows, sub_mult))
    block_elems = block_rows * _LANE
    num_tiles = -(-rows // block_rows)
    num_shards = max(1, min(_NUM_SHARDS, num_tiles))
    steps = -(-num_tiles // num_shards)
    first_pad_tile = n // block_elems     # tiles below this index are all real data

    def to_slab(x):
        flat = jnp.reshape(x, (-1,))
        if n % _LANE != 0:                # rare: only then pay for a pad copy
            flat = jnp.pad(flat, (0, rows * _LANE - n))
        return jnp.reshape(flat, (rows, _LANE))   # free reshape when no pad

    soft2 = to_slab(softMatrix)
    tgt2 = to_slab(target)

    kernel = functools.partial(
        _part_attention_loss_kernel,
        steps=steps, block_rows=block_rows, block_elems=block_elems,
        n_valid=n, first_pad_tile=first_pad_tile)

    if num_shards * steps == num_tiles:   # exact grid: trivial index map
        def tile_index(c, i):
            return (c * steps + i, 0)
    else:                                 # clamp so no DMA starts out of bounds;
        last = num_tiles - 1              # the duplicated tile is skipped in-kernel
        def tile_index(c, i):
            return (jnp.minimum(c * steps + i, last), 0)

    in_spec = pl.BlockSpec((block_rows, _LANE), tile_index)

    partials = pl.pallas_call(
        kernel,
        out_shape=jax.ShapeDtypeStruct((num_shards * _SUB, _LANE), jnp.float32),
        grid_spec=pltpu.PrefetchScalarGridSpec(
            num_scalar_prefetch=0,
            grid=(num_shards, steps),
            in_specs=[in_spec, in_spec],
            out_specs=pl.BlockSpec((_SUB, _LANE), lambda c, i: (c, 0)),
        ),
        compiler_params=pltpu.CompilerParams(
            dimension_semantics=("parallel", "arbitrary"),
            vmem_limit_bytes=_VMEM_LIMIT),
    )(soft2, tgt2)

    # Tiny (<= 16, 128) partial slab; final reduce + scaling in XLA.
    return jnp.sum(partials) / batch * 5.0


def _reference_loss(softMatrix, target):
    p_t = (target * (softMatrix - 0.5) + 0.5) * 0.9999 + 1e-05
    return -jnp.sum(jnp.log(p_t) * (1.0 - p_t)) / softMatrix.shape[0] * 5.0


def _check(shape, key):
    k1, k2 = jax.random.split(key)
    soft = jax.nn.sigmoid(jax.random.normal(k1, shape, jnp.float32))
    tgt = jnp.where(jax.random.uniform(k2, shape) > 0.5, 1.0, -1.0).astype(jnp.float32)
    got = jax.block_until_ready(part_attention_loss(soft, tgt))
    ref = _reference_loss(soft, tgt)
    assert jnp.allclose(got, ref, rtol=1e-4, atol=1e-4), (shape, got, ref)


if __name__ == "__main__":
    key = jax.random.PRNGKey(0)
    k0, k1, k2 = jax.random.split(key, 3)

    _check((2, 4, 16, 16), k0)      # primary small example (B, C, H, W), no pad copy
    _check((2, 3, 7, 5), k1)        # ragged size: exercises the masked boundary tile
    _check((4, 16, 128, 128), k2)   # multi-tile, tile-aligned: accumulation + shards

    print("KERNEL_OK")
</pallas_src>

<mosaic_0001>
module attributes {stable_mosaic.version = 11 : i64} {
  func.func @_part_attention_loss_kernel(%arg0: i32, %arg1: i32, %arg2: memref<16x128xf32, #tpu.memory_space<vmem>>, %arg3: memref<16x128xf32, #tpu.memory_space<vmem>>, %arg4: memref<8x128xf32, #tpu.memory_space<vmem>>) attributes {dimension_semantics = [#tpu.dimension_semantics<parallel>, #tpu.dimension_semantics<arbitrary>], iteration_bounds = array<i64: 1, 1>, scalar_prefetch = 0 : i64, scratch_operands = 0 : i64, tpu.core_type = #tpu.core_type<tc>, window_params = [{transform_indices = @transform_0, window_bounds = array<i64: 16, 128>}, {transform_indices = @transform_1, window_bounds = array<i64: 16, 128>}, {transform_indices = @transform_2, window_bounds = array<i64: 8, 128>}]} {
    %c0_i32 = arith.constant 0 : i32
    %0 = arith.cmpi eq, %arg1, %c0_i32 : i32
    %1 = arith.extui %0 : i1 to i32
    %c0_i32_0 = arith.constant 0 : i32
    %2 = arith.cmpi ne, %1, %c0_i32_0 : i32
    scf.if %2 {
      %cst_15 = arith.constant 0.000000e+00 : f32
      %32 = vector.broadcast %cst_15 : f32 to vector<8x128xf32>
      %c0_16 = arith.constant 0 : index
      %c0_17 = arith.constant 0 : index
      %33 = vector.load %arg4[%c0_16, %c0_17] : memref<8x128xf32, #tpu.memory_space<vmem>>, vector<8x128xf32>
      tpu.vector_store %arg4[%c0_16, %c0_17], %32 {strides = array<i32>} : memref<8x128xf32, #tpu.memory_space<vmem>>, vector<8x128xf32>,
    } else {
    }
    %c0 = arith.constant 0 : index
    %c0_1 = arith.constant 0 : index
    %3 = vector.load %arg2[%c0, %c0_1] : memref<16x128xf32, #tpu.memory_space<vmem>>, vector<16x128xf32>
    %c0_2 = arith.constant 0 : index
    %c0_3 = arith.constant 0 : index
    %4 = vector.load %arg3[%c0_2, %c0_3] : memref<16x128xf32, #tpu.memory_space<vmem>>, vector<16x128xf32>
    %cst = arith.constant 5.000000e-01 : f32
    %5 = vector.broadcast %cst : f32 to vector<16x128xf32>
    %6 = arith.subf %3, %5 : vector<16x128xf32>
    %7 = arith.mulf %4, %6 : vector<16x128xf32>
    %cst_4 = arith.constant 5.000000e-01 : f32
    %8 = vector.broadcast %cst_4 : f32 to vector<16x128xf32>
    %9 = arith.addf %7, %8 : vector<16x128xf32>
    %cst_5 = arith.constant 0.999899983 : f32
    %10 = vector.broadcast %cst_5 : f32 to vector<16x128xf32>
    %11 = arith.mulf %9, %10 : vector<16x128xf32>
    %cst_6 = arith.constant 9.99999974E-6 : f32
    %12 = vector.broadcast %cst_6 : f32 to vector<16x128xf32>
    %13 = arith.addf %11, %12 : vector<16x128xf32>
    %14 = math.log %13 : vector<16x128xf32>
    %cst_7 = arith.constant 0.000000e+00 : f32
    %15 = vector.broadcast %cst_7 : f32 to vector<16x128xf32>
    %16 = arith.subf %15, %14 : vector<16x128xf32>
    %cst_8 = arith.constant 1.000000e+00 : f32
    %17 = vector.broadcast %cst_8 : f32 to vector<16x128xf32>
    %18 = arith.subf %17, %13 : vector<16x128xf32>
    %19 = arith.mulf %16, %18 : vector<16x128xf32>
    %c1_i32 = arith.constant 1 : i32
    %20 = arith.muli %arg0, %c1_i32 : i32
    %21 = arith.addi %20, %arg1 : i32
    %c2048_i32 = arith.constant 2048 : i32
    %22 = arith.muli %21, %c2048_i32 : i32
    %c2048_i32_9 = arith.constant 2048 : i32
    %23 = arith.subi %c2048_i32_9, %22 : i32
    %c1_i32_10 = arith.constant 1 : i32
    %24 = arith.cmpi slt, %21, %c1_i32_10 : i32
    %25 = arith.extui %24 : i1 to i32
    %c0_i32_11 = arith.constant 0 : i32
    %26 = arith.cmpi ne, %25, %c0_i32_11 : i32
    scf.if %26 {
      %c0_15 = arith.constant 0 : index
      %c0_16 = arith.constant 0 : index
      %32 = vector.load %arg4[%c0_15, %c0_16] : memref<8x128xf32, #tpu.memory_space<vmem>>, vector<8x128xf32>
      %33 = vector.shape_cast %19 : vector<16x128xf32> to vector<2x8x128xf32>
      %cst_17 = arith.constant dense<0.000000e+00> : vector<8x128xf32>
      %34 = vector.multi_reduction <add>, %33, %cst_17 [0] : vector<2x8x128xf32> to vector<8x128xf32>
      %35 = arith.addf %32, %34 : vector<8x128xf32>
      %c0_18 = arith.constant 0 : index
      %c0_19 = arith.constant 0 : index
      %36 = vector.load %arg4[%c0_18, %c0_19] : memref<8x128xf32, #tpu.memory_space<vmem>>, vector<8x128xf32>
      tpu.vector_store %arg4[%c0_18, %c0_19], %35 {strides = array<i32>} : memref<8x128xf32, #tpu.memory_space<vmem>>, vector<8x128xf32>,
    } else {
    }
    %c1_i32_12 = arith.constant 1 : i32
    %27 = arith.cmpi sge, %21, %c1_i32_12 : i32
    %c0_i32_13 = arith.constant 0 : i32
    %28 = arith.cmpi sgt, %23, %c0_i32_13 : i32
    %29 = arith.andi %27, %28 : i1
    %30 = arith.extui %29 : i1 to i32
    %c0_i32_14 = arith.constant 0 : i32
    %31 = arith.cmpi ne, %30, %c0_i32_14 : i32
    scf.if %31 {
      %32 = tpu.iota {dimensions = array<i32: 0>} : vector<16x128xi32>
      %33 = tpu.iota {dimensions = array<i32: 1>} : vector<16x128xi32>
      %c128_i32 = arith.constant 128 : i32
      %34 = vector.broadcast %c128_i32 : i32 to vector<16x128xi32>
      %35 = arith.muli %32, %34 : vector<16x128xi32>
      %36 = arith.addi %35, %33 : vector<16x128xi32>
      %37 = vector.broadcast %23 : i32 to vector<16x128xi32>
      %38 = arith.cmpi slt, %36, %37 : vector<16x128xi32>
      %cst_15 = arith.constant 0.000000e+00 : f32
      %39 = vector.broadcast %cst_15 : f32 to vector<16x128xf32>
      %40 = arith.select %38, %19, %39 : vector<16x128xi1>, vector<16x128xf32>
      %c0_16 = arith.constant 0 : index
      %c0_17 = arith.constant 0 : index
      %41 = vector.load %arg4[%c0_16, %c0_17] : memref<8x128xf32, #tpu.memory_space<vmem>>, vector<8x128xf32>
      %42 = vector.shape_cast %40 : vector<16x128xf32> to vector<2x8x128xf32>
      %cst_18 = arith.constant dense<0.000000e+00> : vector<8x128xf32>
      %43 = vector.multi_reduction <add>, %42, %cst_18 [0] : vector<2x8x128xf32> to vector<8x128xf32>
      %44 = arith.addf %41, %43 : vector<8x128xf32>
      %c0_19 = arith.constant 0 : index
      %c0_20 = arith.constant 0 : index
      %45 = vector.load %arg4[%c0_19, %c0_20] : memref<8x128xf32, #tpu.memory_space<vmem>>, vector<8x128xf32>
      tpu.vector_store %arg4[%c0_19, %c0_20], %44 {strides = array<i32>} : memref<8x128xf32, #tpu.memory_space<vmem>>, vector<8x128xf32>,
    } else {
    }
    return
  }
  func.func @transform_0(%arg0: i32, %arg1: i32) -> (i32, i32) {
    %c1_i32 = arith.constant 1 : i32
    %0 = arith.muli %arg0, %c1_i32 : i32
    %1 = arith.addi %0, %arg1 : i32
    %c0_i32 = arith.constant 0 : i32
    %c0_i32_0 = arith.constant 0 : i32
    return %1, %c0_i32 : i32, i32
  }
  func.func @transform_1(%arg0: i32, %arg1: i32) -> (i32, i32) {
    %c1_i32 = arith.constant 1 : i32
    %0 = arith.muli %arg0, %c1_i32 : i32
    %1 = arith.addi %0, %arg1 : i32
    %c0_i32 = arith.constant 0 : i32
    %c0_i32_0 = arith.constant 0 : i32
    return %1, %c0_i32 : i32, i32
  }
  func.func @transform_2(%arg0: i32, %arg1: i32) -> (i32, i32) {
    %c0_i32 = arith.constant 0 : i32
    %c0_i32_0 = arith.constant 0 : i32
    return %arg0, %c0_i32 : i32, i32
  }
}

</mosaic_0001>

<llo_original>
// kernel: part_attention_loss.1
$region0: #{part_attention_loss.1}
  #allocation0 [shape = 'u32[]', space=smem, size = 0x4, offset = 0x4, fixed_abs, tag = 'smem constant byte address 0x4 - core index']
  #allocation1 [shape = 'u32[72,128]{1,0:T(1,128)}', space=vmem, size = 0x9000, scoped, tag = 'internal scratch']
  %s0 = inlined_call_operand.vmem [shape: f32[16,128], index: 0, kind: input, shape index: {}]
  %s1 = inlined_call_operand.vmem [shape: f32[16,128], index: 1, kind: input, shape index: {}]
  %s2 = inlined_call_operand.vmem [shape: f32[8,128], index: 2, kind: output, shape index: {}]
  %s3 = sld [smem:[#allocation0]]
  $region30: #{part_attention_loss.1} parent=0
    _
  %s5 = ssub.s32 1, %s3
  %s6 = scalar_select 0, %s5, %s3
  // Predicated region
  $region2: #{part_attention_loss.1} parent=0 // pred_check
    _
  $region3: #{part_attention_loss.1} parent=0 // pred_check_branch
    %8 = sbr.rel (0) target = $region5
  $region4: #{part_attention_loss.1} parent=0 // pred_region
    %s9 = sadd.s32 0, 0
    %s10 = smul.u32 2, %s9
    %p11 = scmp.lt.s32.totalorder %s10, 1
    %s12 = scalar_select %p11, %s10, 1
    %s13 = smul.addr %s12, 8
    %s14 = scalar_lea.vmem %s0, %s13
    %s15 = sadd.s32 0, 0
    %s16 = smul.u32 2, %s15
  $region5: #{part_attention_loss.1} parent=0 // pred_fallthru
    _
  // Predicated region
  $region6: #{part_attention_loss.1} parent=0 // pred_check
    _
  $region7: #{part_attention_loss.1} parent=0 // pred_check_branch
    %18 = sbr.rel (0) target = $region9
  $region8: #{part_attention_loss.1} parent=0 // pred_region
    %s19 = sadd.s32 0, 0
    %s20 = smul.u32 2, %s19
    %p21 = scmp.lt.s32.totalorder %s20, 1
    %s22 = scalar_select %p21, %s20, 1
    %s23 = smul.addr %s22, 8
    %s24 = scalar_lea.vmem %s1, %s23
    %s25 = sadd.s32 0, 0
    %s26 = smul.u32 2, %s25
  $region9: #{part_attention_loss.1} parent=0 // pred_fallthru
    _
  %s27 = sadd.s32 0, 0
  %s28 = smul.u32 2, %s27
  %p29 = scmp.lt.s32.totalorder %s28, 1
  %s30 = scalar_select %p29, %s28, 1
  %s31 = smul.addr %s30, 8
  %s32 = scalar_lea.vmem %s0, %s31
  %s33 = sadd.s32 0, 0
  %s34 = smul.u32 2, %s33
  %p35 = scmp.lt.s32.totalorder %s34, 1
  %s36 = scalar_select %p35, %s34, 1
  %s37 = smul.addr %s36, 8
  %s38 = scalar_lea.vmem %s1, %s37
  %s39 = sadd.s32 0, 0
  %s40 = smul.u32 2, %s39
  %p41 = scmp.lt.s32.totalorder %s40, 1
  %s42 = scalar_select %p41, %s40, 1
  %s43 = smul.addr %s42, 8
  %s44 = scalar_lea.vmem %s0, %s43
  %s45 = sadd.s32 0, 0
  %s46 = smul.u32 2, %s45
  %s47 = sadd.s32 0, 0
  %s48 = smul.u32 2, %s47
  %p49 = scmp.lt.s32.totalorder %s48, 1
  %s50 = scalar_select %p49, %s48, 1
  %s51 = smul.addr %s50, 8
  %s52 = scalar_lea.vmem %s1, %s51
  %s53 = sadd.s32 0, 0
  %s54 = smul.u32 2, %s53
  %p55 = scmp.eq.s32.totalorder 0, 0
  // Predicated region
  $region10: #{part_attention_loss.1} parent=0 // pred_check
    %p56 = pneg %p55
  $region11: #{part_attention_loss.1} parent=0 // pred_check_branch
    %58 = sbr.rel (%p56) target = $region13
  $region12: #{part_attention_loss.1} parent=0 // pred_region
    %59 = vst [vmem:[%s2] sm:$0xff] 0.0
  $region13: #{part_attention_loss.1} parent=0 // pred_fallthru
    _
  %v60 = vld [vmem:[%s44] sm:$0xff]
  %v61 = vld [vmem:[%s44 + $0x8] sm:$0xff]
  %v62 = vld [vmem:[%s52] sm:$0xff]
  %v63 = vld [vmem:[%s52 + $0x8] sm:$0xff]
  %v64 = vsub.f32 %v60, 0.5
  %v65 = vsub.f32 %v61, 0.5
  %v66 = vmul.f32 %v62, %v64
  %v67 = vmul.f32 %v63, %v65
  %v68 = vadd.f32 %v66, 0.5
  %v69 = vadd.f32 %v67, 0.5
  %v70 = vmul.f32 %v68, 0.9999
  %v71 = vmul.f32 %v69, 0.9999
  %v72 = vadd.f32 %v70, 1e-05
  %v73 = vadd.f32 %v71, 1e-05
  %v74 = vlog2.pop %v72
  %v75 = vmul.f32 %v74, 0.6931472
  %v76 = vlog2.pop %v73
  %v77 = vmul.f32 %v76, 0.6931472
  %v78 = vsub.f32 0.0, %v75
  %v79 = vsub.f32 0.0, %v77
  %v80 = vsub.f32 1.0, %v72
  %v81 = vsub.f32 1.0, %v73
  %v82 = vmul.f32 %v78, %v80
  %v83 = vmul.f32 %v79, %v81
  %s84 = sadd.s32 0, 0
  %s85 = smul.u32 %s84, 2048
  %s86 = ssub.s32 2048, %s85
  %p87 = scmp.lt.s32.totalorder %s84, 1
  // Predicated region
  $region14: #{part_attention_loss.1} parent=0 // pred_check
    %p88 = pneg %p87
  $region15: #{part_attention_loss.1} parent=0 // pred_check_branch
    %90 = sbr.rel (%p88) target = $region17
  $region16: #{part_attention_loss.1} parent=0 // pred_region
    %v91 = vld [vmem:[%s2] sm:$0xff]
    %v92 = vadd.f32 %v82, %v83
    %v93 = vadd.f32 %v91, %v92
    %94 = vst [vmem:[%s2] sm:$0xff] %v93
  $region17: #{part_attention_loss.1} parent=0 // pred_fallthru
    _
  %p95 = scmp.ge.s32.totalorder %s84, 1
  %p96 = scmp.gt.s32.totalorder %s86, 0
  %p97 = pnand %p95, %p96
  %p98 = pneg %p97
  // Predicated region
  $region18: #{part_attention_loss.1} parent=0 // pred_check
    _
  $region19: #{part_attention_loss.1} parent=0 // pred_check_branch
    %100 = sbr.rel (%p97) target = $region21
  $region20: #{part_attention_loss.1} parent=0 // pred_region
    %v101 = vlaneseq
    %v102 = vshrl.u32 %v101, 7
    %v103 = vadd.s32 %v102, 8
    %v104 = vlaneseq
    %v105 = vand.u32 %v104, 127
    %v106 = vmul.u32 %v102, 128
    %v107 = vmul.u32 %v103, 128
    %v108 = vadd.s32 %v106, %v105
    %v109 = vadd.s32 %v107, %v105
    %v110 = vstv %s86
    %vm111 = vcmp.lt.s32.totalorder %v108, %v110
    %vm112 = vcmp.lt.s32.totalorder %v109, %v110
    %v113 = vsel %vm111, %v82, 0.0
    %v114 = vsel %vm112, %v83, 0.0
    %v115 = vld [vmem:[%s2] sm:$0xff]
    %v116 = vadd.f32 %v113, %v114
    %v117 = vadd.f32 %v115, %v116
    %118 = vst [vmem:[%s2] sm:$0xff] %v117
  $region21: #{part_attention_loss.1} parent=0 // pred_fallthru
    _
  // Predicated region
  $region22: #{part_attention_loss.1} parent=0 // pred_check
    _
  $region23: #{part_attention_loss.1} parent=0 // pred_check_branch
    %120 = sbr.rel (0) target = $region25
  $region24: #{part_attention_loss.1} parent=0 // pred_region
    _
  $region25: #{part_attention_loss.1} parent=0 // pred_fallthru
    _
  // Predicated region
  $region26: #{part_attention_loss.1} parent=0 // pred_check
    _
  $region27: #{part_attention_loss.1} parent=0 // pred_check_branch
    %122 = sbr.rel (0) target = $region29
  $region28: #{part_attention_loss.1} parent=0 // pred_region
    _
  $region29: #{part_attention_loss.1} parent=0 // pred_fallthru
    _

</llo_original>
